<compile_context>
chip_gen: v7x
topology: tpu7x:2x2x1
jax: 0.10.0
libtpu: 0.0.40
codegen_flags: <defaults>
</compile_context>

<pallas_src>
import functools

import jax
import jax.numpy as jnp
import numpy as np
from jax.experimental import pallas as pl
from jax.experimental.pallas import tpu as pltpu

# ---- model dims ----
IN_DIM, H1, H2, OUT_DIM = 6, 24, 12, 4

# ---- parameter-slab layout (single f32 [64, 128] VMEM-resident buffer) ----
#  rows  0:8 , cols 0:32 -> W1 pad: w1 (6x24) at [0:6, 0:24], rest zero
#  rows  8:40, cols 0:16 -> W2 pad: w2 (24x12) at [8:32, 0:12], rest zero
#  rows 40:56, cols 0:4  -> W3 pad: w3 (12x4)  at [40:52, 0:4], rest zero
#  row  56, cols 0:24    -> b1 (rest zero)
#  row  57, cols 0:12    -> b2 (rest zero)
#  row  58, cols 0:4     -> b3 (rest zero)
SLAB_ROWS = 64
LANES = 128


def policy_kernel(x_ref, p_ref, o_ref):
    x = x_ref[...]                                               # [tile_b, 6]
    tb = x.shape[0]

    # Pad the contraction dim 6 -> 8 in-registers so the W1 slice below is a
    # whole (8, lanes) sub-tile (no ragged 6-row slice each grid step).
    x8 = jnp.concatenate(
        [x, jnp.zeros((tb, 8 - IN_DIM), jnp.float32)], axis=-1)  # [tile_b, 8]

    # Linear(6->24) + ReLU.  Pad rows/cols of W1/b1 are zero, so the padded
    # output lanes stay exactly zero through the ReLU.
    w1 = p_ref[0:8, 0:32]                                        # [8, 32]
    b1 = p_ref[56:57, 0:32]                                      # [1, 32]
    h1 = jnp.maximum(
        jnp.dot(x8, w1, preferred_element_type=jnp.float32) + b1, 0.0)

    # Linear(24->12) + ReLU (K = 32, pad K-rows / out-cols are zero).
    w2 = p_ref[8:40, 0:16]                                       # [32, 16]
    b2 = p_ref[57:58, 0:16]                                      # [1, 16]
    h2 = jnp.maximum(
        jnp.dot(h1, w2, preferred_element_type=jnp.float32) + b2, 0.0)

    # Linear(12->4) (K = 16, pad K-rows are zero).
    w3 = p_ref[40:56, 0:OUT_DIM]                                 # [16, 4]
    b3 = p_ref[58:59, 0:OUT_DIM]                                 # [1, 4]
    logits = jnp.dot(h2, w3, preferred_element_type=jnp.float32) + b3  # [tile_b, 4]

    # Numerically stable, EXACT softmax over the 4 real classes (no approx
    # reciprocal, no padded-lane tricks): rows sum to 1 to f32 precision.
    m = jnp.max(logits, axis=-1, keepdims=True)
    e = jnp.exp(logits - m)
    o_ref[...] = (e / jnp.sum(e, axis=-1, keepdims=True)).astype(o_ref.dtype)


def pack_params(params):
    """Pack w1,b1,w2,b2,w3,b3 into one zero-padded f32 [64,128] slab."""
    slab = jnp.zeros((SLAB_ROWS, LANES), dtype=jnp.float32)
    slab = slab.at[0:IN_DIM, 0:H1].set(params["w1"])
    slab = slab.at[8:8 + H1, 0:H2].set(params["w2"])
    slab = slab.at[40:40 + H2, 0:OUT_DIM].set(params["w3"])
    slab = slab.at[56, 0:H1].set(params["b1"])
    slab = slab.at[57, 0:H2].set(params["b2"])
    slab = slab.at[58, 0:OUT_DIM].set(params["b3"])
    return slab


def _choose_tile_b(batch):
    """~cdiv(B, 8) rows/step (>= ~8 grid steps for v7x's 2 TCs + pipeline depth),
    rounded up to a multiple of 8, capped at 4096 rows."""
    tile = -(-batch // 8)               # cdiv(batch, 8)
    tile = ((tile + 7) // 8) * 8        # round up to multiple of 8
    return max(8, min(4096, tile))


@functools.partial(jax.jit, static_argnames=("tile_b",))
def _policy_forward_impl(x, param_slab, tile_b):
    B = x.shape[0]
    grid_b = pl.cdiv(B, tile_b)
    return pl.pallas_call(
        policy_kernel,
        out_shape=jax.ShapeDtypeStruct((B, OUT_DIM), jnp.float32),
        grid=(grid_b,),
        in_specs=[
            pl.BlockSpec((tile_b, IN_DIM), lambda i: (i, 0)),       # batch tile
            pl.BlockSpec((SLAB_ROWS, LANES), lambda i: (0, 0)),     # params resident
        ],
        out_specs=pl.BlockSpec((tile_b, OUT_DIM), lambda i: (i, 0)),  # narrow [tile_b,4]
        compiler_params=pltpu.CompilerParams(
            dimension_semantics=("parallel",)),
    )(x, param_slab)


def policy_forward(x, param_slab, tile_b=None):
    """x: [B, 6] f32; param_slab: [64, 128] f32. Returns [B, 4] probabilities."""
    if tile_b is None:
        tile_b = _choose_tile_b(x.shape[0])
    return _policy_forward_impl(x, param_slab, tile_b)


def init_params(key):
    """PyTorch nn.Linear default init: U(-1/sqrt(fan_in), 1/sqrt(fan_in))."""
    dims = [(IN_DIM, H1), (H1, H2), (H2, OUT_DIM)]
    params = {}
    keys = jax.random.split(key, 2 * len(dims))
    for i, (fan_in, fan_out) in enumerate(dims):
        bound = 1.0 / np.sqrt(fan_in)
        params[f"w{i + 1}"] = jax.random.uniform(
            keys[2 * i], (fan_in, fan_out), minval=-bound, maxval=bound,
            dtype=jnp.float32)
        params[f"b{i + 1}"] = jax.random.uniform(
            keys[2 * i + 1], (fan_out,), minval=-bound, maxval=bound,
            dtype=jnp.float32)
    return params


def _reference(x, p):
    h1 = jnp.maximum(x @ p["w1"] + p["b1"], 0.0)
    h2 = jnp.maximum(h1 @ p["w2"] + p["b2"], 0.0)
    return jax.nn.softmax(h2 @ p["w3"] + p["b3"], axis=-1)


if __name__ == "__main__":
    key = jax.random.PRNGKey(0)
    k_params, k_x = jax.random.split(key)

    params = init_params(k_params)
    slab = pack_params(params)

    # Deliberately not a multiple of the tile: exercises the ragged final block
    # (handled by Pallas masking, no wrapper-side padding pass over x).
    B = 1000
    x = jax.random.normal(k_x, (B, IN_DIM), dtype=jnp.float32)

    out = jax.block_until_ready(policy_forward(x, slab))
    ref = _reference(x, params)

    assert out.shape == (B, OUT_DIM)
    # Remaining tolerance only covers XLA-vs-Mosaic f32 matmul pass differences;
    # the softmax itself is exact (no approx reciprocal).
    np.testing.assert_allclose(np.asarray(out), np.asarray(ref),
                               atol=5e-4, rtol=1e-3)
    # Exact-divide softmax: rows sum to 1 to f32 precision.
    np.testing.assert_allclose(np.asarray(out).sum(axis=-1), 1.0, atol=1e-6)

    # Tiny per-step RL batch path (B smaller than one tile).
    x_small = x[:3]
    out_small = jax.block_until_ready(policy_forward(x_small, slab))
    np.testing.assert_allclose(np.asarray(out_small), np.asarray(ref[:3]),
                               atol=5e-4, rtol=1e-3)

    print("KERNEL_OK")
</pallas_src>

<mosaic_0001>
module attributes {stable_mosaic.version = 11 : i64} {
  func.func @policy_kernel(%arg0: i32, %arg1: memref<128x6xf32, #tpu.memory_space<vmem>>, %arg2: memref<64x128xf32, #tpu.memory_space<vmem>>, %arg3: memref<128x4xf32, #tpu.memory_space<vmem>>) attributes {dimension_semantics = [#tpu.dimension_semantics<parallel>], iteration_bounds = array<i64: 8>, scalar_prefetch = 0 : i64, scratch_operands = 0 : i64, tpu.core_type = #tpu.core_type<tc>, window_params = [{transform_indices = @transform_0, window_bounds = array<i64: 128, 6>}, {pipeline_mode = #tpu.pipeline_mode<synchronous>, transform_indices = @transform_1, window_bounds = array<i64: 64, 128>}, {transform_indices = @transform_2, window_bounds = array<i64: 128, 4>}]} {
    %c0 = arith.constant 0 : index
    %c0_0 = arith.constant 0 : index
    %0 = vector.load %arg1[%c0, %c0_0] : memref<128x6xf32, #tpu.memory_space<vmem>>, vector<128x6xf32>
    %cst = arith.constant 0.000000e+00 : f32
    %1 = vector.broadcast %cst : f32 to vector<128x2xf32>
    %2 = tpu.concatenate %0, %1 in 1 : vector<128x6xf32>, vector<128x2xf32> -> vector<128x8xf32>
    %c0_1 = arith.constant 0 : index
    %c0_2 = arith.constant 0 : index
    %3 = vector.load %arg2[%c0_1, %c0_2] : memref<64x128xf32, #tpu.memory_space<vmem>>, vector<8x32xf32>
    %c56 = arith.constant 56 : index
    %c0_3 = arith.constant 0 : index
    %4 = vector.load %arg2[%c56, %c0_3] : memref<64x128xf32, #tpu.memory_space<vmem>>, vector<1x32xf32>
    %cst_4 = arith.constant dense<0.000000e+00> : vector<128x32xf32>
    %5 = tpu.matmul %2, %3, %cst_4 {dimension_numbers = #tpu.dot_dimension_numbers<[1], [0], [0], [1], [0, 0, 1, 1], [], []>} : vector<128x8xf32>, vector<8x32xf32>, vector<128x32xf32> -> vector<128x32xf32>
    %6 = vector.broadcast %4 : vector<1x32xf32> to vector<128x32xf32>
    %7 = arith.addf %5, %6 : vector<128x32xf32>
    %cst_5 = arith.constant 0.000000e+00 : f32
    %8 = vector.broadcast %cst_5 : f32 to vector<128x32xf32>
    %9 = arith.maximumf %7, %8 : vector<128x32xf32>
    %c8 = arith.constant 8 : index
    %c0_6 = arith.constant 0 : index
    %10 = vector.load %arg2[%c8, %c0_6] : memref<64x128xf32, #tpu.memory_space<vmem>>, vector<32x16xf32>
    %c57 = arith.constant 57 : index
    %c0_7 = arith.constant 0 : index
    %11 = vector.load %arg2[%c57, %c0_7] : memref<64x128xf32, #tpu.memory_space<vmem>>, vector<1x16xf32>
    %cst_8 = arith.constant dense<0.000000e+00> : vector<128x16xf32>
    %12 = tpu.matmul %9, %10, %cst_8 {dimension_numbers = #tpu.dot_dimension_numbers<[1], [0], [0], [1], [0, 0, 1, 1], [], []>} : vector<128x32xf32>, vector<32x16xf32>, vector<128x16xf32> -> vector<128x16xf32>
    %13 = vector.broadcast %11 : vector<1x16xf32> to vector<128x16xf32>
    %14 = arith.addf %12, %13 : vector<128x16xf32>
    %cst_9 = arith.constant 0.000000e+00 : f32
    %15 = vector.broadcast %cst_9 : f32 to vector<128x16xf32>
    %16 = arith.maximumf %14, %15 : vector<128x16xf32>
    %c40 = arith.constant 40 : index
    %c0_10 = arith.constant 0 : index
    %17 = vector.load %arg2[%c40, %c0_10] : memref<64x128xf32, #tpu.memory_space<vmem>>, vector<16x4xf32>
    %c58 = arith.constant 58 : index
    %c0_11 = arith.constant 0 : index
    %18 = vector.load %arg2[%c58, %c0_11] : memref<64x128xf32, #tpu.memory_space<vmem>>, vector<1x4xf32>
    %cst_12 = arith.constant dense<0.000000e+00> : vector<128x4xf32>
    %19 = tpu.matmul %16, %17, %cst_12 {dimension_numbers = #tpu.dot_dimension_numbers<[1], [0], [0], [1], [0, 0, 1, 1], [], []>} : vector<128x16xf32>, vector<16x4xf32>, vector<128x4xf32> -> vector<128x4xf32>
    %20 = vector.broadcast %18 : vector<1x4xf32> to vector<128x4xf32>
    %21 = arith.addf %19, %20 : vector<128x4xf32>
    %cst_13 = arith.constant dense<0xFF800000> : vector<128xf32>
    %22 = vector.multi_reduction <maximumf>, %21, %cst_13 [1] : vector<128x4xf32> to vector<128xf32>
    %23 = vector.shape_cast %22 : vector<128xf32> to vector<128x1xf32>
    %24 = vector.broadcast %23 : vector<128x1xf32> to vector<128x4xf32>
    %25 = arith.subf %21, %24 : vector<128x4xf32>
    %26 = math.exp %25 : vector<128x4xf32>
    %cst_14 = arith.constant dense<0.000000e+00> : vector<128xf32>
    %27 = vector.multi_reduction <add>, %26, %cst_14 [1] : vector<128x4xf32> to vector<128xf32>
    %28 = vector.shape_cast %27 : vector<128xf32> to vector<128x1xf32>
    %29 = vector.broadcast %28 : vector<128x1xf32> to vector<128x4xf32>
    %30 = arith.divf %26, %29 : vector<128x4xf32>
    %c0_15 = arith.constant 0 : index
    %c0_16 = arith.constant 0 : index
    %31 = vector.load %arg3[%c0_15, %c0_16] : memref<128x4xf32, #tpu.memory_space<vmem>>, vector<128x4xf32>
    tpu.vector_store %arg3[%c0_15, %c0_16], %30 {strides = array<i32>} : memref<128x4xf32, #tpu.memory_space<vmem>>, vector<128x4xf32>,
    return
  }
  func.func @transform_0(%arg0: i32) -> (i32, i32) {
    %c0_i32 = arith.constant 0 : i32
    %c0_i32_0 = arith.constant 0 : i32
    return %arg0, %c0_i32 : i32, i32
  }
  func.func @transform_1(%arg0: i32) -> (i32, i32) {
    %c0_i32 = arith.constant 0 : i32
    %c0_i32_0 = arith.constant 0 : i32
    %c0_i32_1 = arith.constant 0 : i32
    return %c0_i32, %c0_i32_0 : i32, i32
  }
  func.func @transform_2(%arg0: i32) -> (i32, i32) {
    %c0_i32 = arith.constant 0 : i32
    %c0_i32_0 = arith.constant 0 : i32
    return %arg0, %c0_i32 : i32, i32
  }
}

</mosaic_0001>

<llo_original>
// kernel: _policy_forward_impl.1
$region0: #{_policy_forward_impl.1}
  #allocation0 [shape = 'u32[]', space=smem, size = 0x4, offset = 0x4, fixed_abs, tag = 'smem constant byte address 0x4 - core index']
  #allocation1 [shape = 'u32[144,128]{1,0:T(1,128)}', space=vmem, size = 0x12000, scoped, tag = 'internal scratch']
  %s0 = inlined_call_operand.vmem [shape: f32[1000,6], index: 0, kind: input, shape index: {}]
  %s1 = inlined_call_operand.vmem [shape: f32[64,128], index: 1, kind: input, shape index: {}]
  %s2 = inlined_call_operand.vmem [shape: f32[1000,4], index: 2, kind: output, shape index: {}]
  %s3 = sld [smem:[#allocation0]]
  $region89: #{_policy_forward_impl.1} parent=0
    _
  %s5 = ssub.s32 1, %s3
  %s6 = scalar_select 0, %s5, %s3
  $region1: #{_policy_forward_impl.1} parent=0
    #allocation2 [shape = 'u8[131072]{0}', space=vmem, size = 0x20000, scoped, tag = 'output window, operand 0']
    loop: start=0, step=1, limit=10
    $region2: #{_policy_forward_impl.1} parent=1 // loop_pre_header
      _
    $region3: #{_policy_forward_impl.1} parent=1 // loop_header
      %s8 = sphi 0, %s12
      %p9 = scmp.ge.s32.totalorder %s8, 10
      %s18 = sphi 0, %s20
      %s21 = sphi 0, %s18
      %s22 = sphi 0, %s21
      %s38 = sphi 0, %s22
      %s42 = sphi 0, %s42
      %s44 = sphi 0, %s42
      %s45 = sphi 0, %s44
      %s59 = sphi 0, %s45
      %s65 = sphi 0, %s67
      %s68 = sphi 0, %s65
      %s69 = sphi 0, %s68
      %s85 = sphi 0, %s69
    $region4: #{_policy_forward_impl.1} parent=1 // loop_header_branch
      %11 = sbr.rel (%p9) target = $region8
    $region5: #{_policy_forward_impl.1} parent=1 // loop_body
      %s13 = ssub.s32 %s8, 1
      %s14 = ssub.s32 %s8, 2
      %s15 = sadd.s32 %s8, 1
      %s16 = ssub.s32 %s8, %s15
      %p17 = scmp.eq.s32.totalorder %s16, 0
      %s19 = sadd.s32 %s18, 1
      %s20 = scalar_select %p17, %s18, %s19
      %p23 = pneg %p17
      %p24 = scmp.eq.s32.totalorder %s8, 7
      %p25 = por %p23, %p24
      %p26 = scmp.ne.s32.totalorder %s18, %s21
      %p27 = scmp.eq.s32.totalorder %s8, 0
      %p28 = por %p26, %p27
      %p29 = scmp.ne.s32.totalorder %s18, %s21
      %p30 = scmp.eq.s32.totalorder %s13, 7
      %p31 = por %p29, %p30
      %p32 = scmp.ne.s32.totalorder %s21, %s22
      %p33 = scmp.eq.s32.totalorder %s13, 0
      %p34 = por %p32, %p33
      %p35 = scmp.ne.s32.totalorder %s21, %s22
      %p36 = scmp.eq.s32.totalorder %s14, 7
      %p37 = por %p35, %p36
      %p39 = scmp.ne.s32.totalorder %s22, %s38
      %p40 = scmp.eq.s32.totalorder %s14, 0
      %p41 = por %p39, %p40
      %s43 = sadd.s32 %s42, 1
      %p46 = scmp.eq.s32.totalorder %s8, 7
      %p47 = scmp.ne.s32.totalorder %s42, %s44
      %p48 = scmp.eq.s32.totalorder %s8, 0
      %p49 = por %p47, %p48
      %p50 = scmp.ne.s32.totalorder %s42, %s44
      %p51 = scmp.eq.s32.totalorder %s13, 7
      %p52 = por %p50, %p51
      %p53 = scmp.ne.s32.totalorder %s44, %s45
      %p54 = scmp.eq.s32.totalorder %s13, 0
      %p55 = por %p53, %p54
      %p56 = scmp.ne.s32.totalorder %s44, %s45
      %p57 = scmp.eq.s32.totalorder %s14, 7
      %p58 = por %p56, %p57
      %p60 = scmp.ne.s32.totalorder %s45, %s59
      %p61 = scmp.eq.s32.totalorder %s14, 0
      %p62 = por %p60, %p61
      %s63 = ssub.s32 %s8, %s15
      %p64 = scmp.eq.s32.totalorder %s63, 0
      %s66 = sadd.s32 %s65, 1
      %s67 = scalar_select %p64, %s65, %s66
      %p70 = pneg %p64
      %p71 = scmp.eq.s32.totalorder %s8, 7
      %p72 = por %p70, %p71
      %p73 = scmp.ne.s32.totalorder %s65, %s68
      %p74 = scmp.eq.s32.totalorder %s8, 0
      %p75 = por %p73, %p74
      %p76 = scmp.ne.s32.totalorder %s65, %s68
      %p77 = scmp.eq.s32.totalorder %s13, 7
      %p78 = por %p76, %p77
      %p79 = scmp.ne.s32.totalorder %s68, %s69
      %p80 = scmp.eq.s32.totalorder %s13, 0
      %p81 = por %p79, %p80
      %p82 = scmp.ne.s32.totalorder %s68, %s69
      %p83 = scmp.eq.s32.totalorder %s14, 7
      %p84 = por %p82, %p83
      %p86 = scmp.ne.s32.totalorder %s69, %s85
      %p87 = scmp.eq.s32.totalorder %s14, 0
      %p88 = por %p86, %p87
      %p89 = scmp.le.s32.totalorder 1, %s8
      %p90 = scmp.lt.s32.totalorder %s8, 9
      %p91 = pnand %p89, %p90
      %p92 = pneg %p91
      // Predicated region
      $region9: #{_policy_forward_impl.1} parent=5 // pred_check
        _
      $region10: #{_policy_forward_impl.1} parent=5 // pred_check_branch
        %94 = sbr.rel (%p91) target = $region12
      $region11: #{_policy_forward_impl.1} parent=5 // pred_region
        %s95 = ssub.s32 %s8, 1
        // Predicated region
        $region13: #{_policy_forward_impl.1} parent=11 // pred_check
          %p96 = pneg %p55
        $region14: #{_policy_forward_impl.1} parent=11 // pred_check_branch
          %98 = sbr.rel (%p96) target = $region16
        $region15: #{_policy_forward_impl.1} parent=11 // pred_region
          _
        $region16: #{_policy_forward_impl.1} parent=11 // pred_fallthru
          _
      $region12: #{_policy_forward_impl.1} parent=5 // pred_fallthru
        _
      %p99 = scmp.lt.s32.totalorder %s8, 8
      // Predicated region
      $region17: #{_policy_forward_impl.1} parent=5 // pred_check
        %p100 = pneg %p99
      $region18: #{_policy_forward_impl.1} parent=5 // pred_check_branch
        %102 = sbr.rel (%p100) target = $region20
      $region19: #{_policy_forward_impl.1} parent=5 // pred_region
        // Predicated region
        $region21: #{_policy_forward_impl.1} parent=19 // pred_check
          %p103 = pneg %p28
        $region22: #{_policy_forward_impl.1} parent=19 // pred_check_branch
          %105 = sbr.rel (%p103) target = $region24
        $region23: #{_policy_forward_impl.1} parent=19 // pred_region
          %s106 = smul.u32 16, %s8
          %s107 = ssub.s32 125, %s106
          %p108 = scmp.lt.s32.totalorder %s107, 16
          %s109 = scalar_select %p108, %s107, 16
          %s110 = smul.u32 128, %s109
          %p111 = scmp.lt.s32.totalorder %s106, 124
          %s112 = scalar_select %p111, %s106, 124
          %s113 = smul.addr %s112, 8
          %s114 = scalar_lea.vmem %s0, %s113
          %s115 = smul.u32 16, %s8
          %s116 = ssub.s32 125, %s115
          %p117 = scmp.lt.s32.totalorder %s116, 16
          %s118 = scalar_select %p117, %s116, 16
          %s119 = smul.u32 128, %s118
        $region24: #{_policy_forward_impl.1} parent=19 // pred_fallthru
          _
      $region20: #{_policy_forward_impl.1} parent=5 // pred_fallthru
        _
      %p120 = scmp.le.s32.totalorder 1, %s8
      %p121 = scmp.lt.s32.totalorder %s8, 9
      %p122 = pnand %p120, %p121
      %p123 = pneg %p122
      // Predicated region
      $region25: #{_policy_forward_impl.1} parent=5 // pred_check
        _
      $region26: #{_policy_forward_impl.1} parent=5 // pred_check_branch
        %125 = sbr.rel (%p122) target = $region28
      $region27: #{_policy_forward_impl.1} parent=5 // pred_region
        %s126 = ssub.s32 %s8, 1
        %s127 = smul.u32 16, %s13
        %s128 = ssub.s32 125, %s127
        %p129 = scmp.lt.s32.totalorder %s128, 16
        %s130 = scalar_select %p129, %s128, 16
        %s131 = smul.u32 128, %s130
        %p132 = scmp.lt.s32.totalorder %s127, 124
        %s133 = scalar_select %p132, %s127, 124
        %s134 = smul.addr %s133, 8
        %s135 = scalar_lea.vmem %s0, %s134
        %p136 = pneg %p34
        %p137 = pneg %p31
        %p138 = pneg %p55
        %p139 = pneg %p52
        %p140 = pneg %p81
        %p141 = pneg %p78
        %s142 = sand.u32 %s68, 1
        %s143 = sand.u32 %s68, 1
        %s144 = smul.addr %s143, 128
        %s145 = scalar_lea.vmem [#allocation2], %s144
        %s146 = smul.u32 16, %s13
        %s147 = ssub.s32 125, %s146
        %p148 = scmp.lt.s32.totalorder %s147, 16
        %s149 = scalar_select %p148, %s147, 16
        %s150 = smul.u32 128, %s149
        %p151 = scmp.lt.s32.totalorder %s146, 124
        %s152 = scalar_select %p151, %s146, 124
        %s153 = smul.addr %s152, 8
        %s154 = scalar_lea.vmem %s0, %s153
        %s155 = smul.u32 16, %s13
        %s156 = ssub.s32 125, %s155
        %p157 = scmp.lt.s32.totalorder %s156, 16
        %s158 = scalar_select %p157, %s156, 16
        %s159 = smul.u32 128, %s158
        %s160 = smul.u32 16, %s13
        %s161 = ssub.s32 125, %s160
        %p162 = scmp.lt.s32.totalorder %s161, 16
        %s163 = scalar_select %p162, %s161, 16
        %s164 = smul.u32 128, %s163
        %v165 = vld [vmem:[%s154] sm:$0xff]
        %v166 = vld [vmem:[%s154 + $0x8] sm:$0xff]
        %v167 = vld [vmem:[%s154 + $0x10] sm:$0xff]
        %v168 = vld [vmem:[%s154 + $0x18] sm:$0xff]
        %v169 = vld [vmem:[%s154 + $0x20] sm:$0xff]
        %v170 = vld [vmem:[%s154 + $0x28] sm:$0xff]
        %v171 = vld [vmem:[%s154 + $0x30] sm:$0xff]
        %v172 = vld [vmem:[%s154 + $0x38] sm:$0xff]
        %v173 = vld [vmem:[%s154 + $0x40] sm:$0xff]
        %v174 = vld [vmem:[%s154 + $0x48] sm:$0xff]
        %v175 = vld [vmem:[%s154 + $0x50] sm:$0xff]
        %v176 = vld [vmem:[%s154 + $0x58] sm:$0xff]
        %v177 = vld [vmem:[%s154 + $0x60] sm:$0xff]
        %v178 = vld [vmem:[%s154 + $0x68] sm:$0xff]
        %v179 = vld [vmem:[%s154 + $0x70] sm:$0xff]
        %v180 = vld [vmem:[%s154 + $0x78] sm:$0xff]
        %vm181 = vcmask 48128
        %v182 = vsel %vm181, %v165, 0.0
        %v183 = vsel %vm181, %v166, 0.0
        %v184 = vsel %vm181, %v167, 0.0
        %v185 = vsel %vm181, %v168, 0.0
        %v186 = vsel %vm181, %v169, 0.0
        %v187 = vsel %vm181, %v170, 0.0
        %v188 = vsel %vm181, %v171, 0.0
        %v189 = vsel %vm181, %v172, 0.0
        %v190 = vsel %vm181, %v173, 0.0
        %v191 = vsel %vm181, %v174, 0.0
        %v192 = vsel %vm181, %v175, 0.0
        %v193 = vsel %vm181, %v176, 0.0
        %v194 = vsel %vm181, %v177, 0.0
        %v195 = vsel %vm181, %v178, 0.0
        %v196 = vsel %vm181, %v179, 0.0
        %v197 = vsel %vm181, %v180, 0.0
        %v198 = vld [vmem:[%s1] sm:$0xff]
        %v199 = vld [vmem:[%s1 + $0x38] sm:$0x1]
        %v200 = vlaneseq
        %v201 = vshrl.u32 %v200, 7
        %v202 = vsub.s32 0, %v201
        %v203 = vrot.slane %v199, %v202
        %vm204 = vcmask 64512
        %v206 = vsel %vm204, %v182, 0
        %v209 = vsel %vm204, %v183, 0
        %v212 = vsel %vm204, %v184, 0
        %v215 = vsel %vm204, %v185, 0
        %v218 = vsel %vm204, %v186, 0
        %v221 = vsel %vm204, %v187, 0
        %v224 = vsel %vm204, %v188, 0
        %v227 = vsel %vm204, %v189, 0
        %v230 = vsel %vm204, %v190, 0
        %v233 = vsel %vm204, %v191, 0
        %v236 = vsel %vm204, %v192, 0
        %v239 = vsel %vm204, %v193, 0
        %v242 = vsel %vm204, %v194, 0
        %v245 = vsel %vm204, %v195, 0
        %v248 = vsel %vm204, %v196, 0
        %v251 = vsel %vm204, %v197, 0
        %253 = vmatprep.subr.mxu0 0.0
        %254 = vmatpush1.msra.mxu0 %v198
        %255 = vmatprep.subr.mxu0 0.0
        %256 = vmatpush1.msra.mxu0 0.0
        %257 = vmatprep.subr.mxu0 0.0
        %258 = vmatpush1.msra.mxu0 0.0
        %259 = vmatprep.subr.mxu0 0.0
        %260 = vmatpush1.msra.mxu0 0.0
        %261 = vmatprep.subr.mxu0 0.0
        %262 = vmatpush1.msra.mxu0 0.0
        %263 = vmatprep.subr.mxu0 0.0
        %264 = vmatpush1.msra.mxu0 0.0
        %265 = vmatprep.subr.mxu0 0.0
        %266 = vmatpush1.msra.mxu0 0.0
        %267 = vmatprep.subr.mxu0 0.0
        %268 = vmatpush1.msra.mxu0 0.0
        %269 = vmatprep.subr.mxu0 0.0
        %270 = vmatpush1.msra.mxu0 0.0
        %271 = vmatprep.subr.mxu0 0.0
        %272 = vmatpush1.msra.mxu0 0.0
        %273 = vmatprep.subr.mxu0 0.0
        %274 = vmatpush1.msra.mxu0 0.0
        %275 = vmatprep.subr.mxu0 0.0
        %276 = vmatpush1.msra.mxu0 0.0
        %277 = vmatprep.subr.mxu0 0.0
        %278 = vmatpush1.msra.mxu0 0.0
        %279 = vmatprep.subr.mxu0 0.0
        %280 = vmatpush1.msra.mxu0 0.0
        %281 = vmatprep.subr.mxu0 0.0
        %282 = vmatpush1.msra.mxu0 0.0
        %283 = vmatprep.subr.mxu0 0.0
        %284 = vmatpush1.msra.mxu0 0.0
        %285 = vmatprep.subr.mxu0 0.0
        %286 = vmatpush1.msra.mxu0 0.0
        %287 = vmatprep.subr.mxu0 0.0
        %288 = vmatpush1.msra.mxu0 0.0
        %289 = vmatprep.subr.mxu0 0.0
        %290 = vmatpush1.msra.mxu0 0.0
        %291 = vmatprep.subr.mxu0 0.0
        %292 = vmatpush1.msra.mxu0 0.0
        %293 = vmatprep.subr.mxu0 0.0
        %294 = vmatpush1.msra.mxu0 0.0
        %295 = vmatprep.subr.mxu0 0.0
        %296 = vmatpush1.msra.mxu0 0.0
        %297 = vmatprep.subr.mxu0 0.0
        %298 = vmatpush1.msra.mxu0 0.0
        %299 = vmatprep.subr.mxu0 0.0
        %300 = vmatpush1.msra.mxu0 0.0
        %301 = vmatprep.subr.mxu0 0.0
        %302 = vmatpush1.msra.mxu0 0.0
        %303 = vmatprep.subr.mxu0 0.0
        %304 = vmatpush1.msra.mxu0 0.0
        %305 = vmatprep.subr.mxu0 0.0
        %306 = vmatpush1.msra.mxu0 0.0
        %307 = vmatprep.subr.mxu0 0.0
        %308 = vmatpush1.msra.mxu0 0.0
        %309 = vmatprep.subr.mxu0 0.0
        %310 = vmatpush1.msra.mxu0 0.0
        %311 = vmatprep.subr.mxu0 0.0
        %312 = vmatpush1.msra.mxu0 0.0
        %313 = vmatprep.subr.mxu0 0.0
        %314 = vmatpush1.msra.mxu0 0.0
        %315 = vmatprep.subr.mxu0 0.0
        %316 = vmatpush1.msra.mxu0 0.0
        %317 = vmatprep.mubr.f32.mxu0 0.0
        %318 = vmatmul.mubr.f32.gmra.mrb[0].mxu0 %v206
        %v319 = vpop.f32.mrb[0].mxu0
        %v320 = vadd.f32 %v203, %v319
        %v321 = vpop.f32.mrb[0].mxu0
        %322 = vmatprep.mubr.f32.mxu0 0.0
        %323 = vmatmul.mubr.f32.gmra.mrb[0].mxu0 %v209
        %v324 = vpop.f32.mrb[0].mxu0
        %v325 = vadd.f32 %v203, %v324
        %v326 = vpop.f32.mrb[0].mxu0
        %327 = vmatprep.mubr.f32.mxu0 0.0
        %328 = vmatmul.mubr.f32.gmra.mrb[0].mxu0 %v212
        %v329 = vpop.f32.mrb[0].mxu0
        %v330 = vadd.f32 %v203, %v329
        %v331 = vpop.f32.mrb[0].mxu0
        %332 = vmatprep.mubr.f32.mxu0 0.0
        %333 = vmatmul.mubr.f32.gmra.mrb[0].mxu0 %v215
        %v334 = vpop.f32.mrb[0].mxu0
        %v335 = vadd.f32 %v203, %v334
        %v336 = vpop.f32.mrb[0].mxu0
        %337 = vmatprep.mubr.f32.mxu0 0.0
        %338 = vmatmul.mubr.f32.gmra.mrb[0].mxu0 %v218
        %v339 = vpop.f32.mrb[0].mxu0
        %v340 = vadd.f32 %v203, %v339
        %v341 = vpop.f32.mrb[0].mxu0
        %342 = vmatprep.mubr.f32.mxu0 0.0
        %343 = vmatmul.mubr.f32.gmra.mrb[0].mxu0 %v221
        %v344 = vpop.f32.mrb[0].mxu0
        %v345 = vadd.f32 %v203, %v344
        %v346 = vpop.f32.mrb[0].mxu0
        %347 = vmatprep.mubr.f32.mxu0 0.0
        %348 = vmatmul.mubr.f32.gmra.mrb[0].mxu0 %v224
        %v349 = vpop.f32.mrb[0].mxu0
        %v350 = vadd.f32 %v203, %v349
        %v351 = vpop.f32.mrb[0].mxu0
        %352 = vmatprep.mubr.f32.mxu0 0.0
        %353 = vmatmul.mubr.f32.gmra.mrb[0].mxu0 %v227
        %v354 = vpop.f32.mrb[0].mxu0
        %v355 = vadd.f32 %v203, %v354
        %v356 = vpop.f32.mrb[0].mxu0
        %357 = vmatprep.mubr.f32.mxu0 0.0
        %358 = vmatmul.mubr.f32.gmra.mrb[0].mxu0 %v230
        %v359 = vpop.f32.mrb[0].mxu0
        %v360 = vadd.f32 %v203, %v359
        %v361 = vpop.f32.mrb[0].mxu0
        %362 = vmatprep.mubr.f32.mxu0 0.0
        %363 = vmatmul.mubr.f32.gmra.mrb[0].mxu0 %v233
        %v364 = vpop.f32.mrb[0].mxu0
        %v365 = vadd.f32 %v203, %v364
        %v366 = vpop.f32.mrb[0].mxu0
        %367 = vmatprep.mubr.f32.mxu0 0.0
        %368 = vmatmul.mubr.f32.gmra.mrb[0].mxu0 %v236
        %v369 = vpop.f32.mrb[0].mxu0
        %v370 = vadd.f32 %v203, %v369
        %v371 = vpop.f32.mrb[0].mxu0
        %372 = vmatprep.mubr.f32.mxu0 0.0
        %373 = vmatmul.mubr.f32.gmra.mrb[0].mxu0 %v239
        %v374 = vpop.f32.mrb[0].mxu0
        %v375 = vadd.f32 %v203, %v374
        %v376 = vpop.f32.mrb[0].mxu0
        %377 = vmatprep.mubr.f32.mxu0 0.0
        %378 = vmatmul.mubr.f32.gmra.mrb[0].mxu0 %v242
        %v379 = vpop.f32.mrb[0].mxu0
        %v380 = vadd.f32 %v203, %v379
        %v381 = vpop.f32.mrb[0].mxu0
        %382 = vmatprep.mubr.f32.mxu0 0.0
        %383 = vmatmul.mubr.f32.gmra.mrb[0].mxu0 %v245
        %v384 = vpop.f32.mrb[0].mxu0
        %v385 = vadd.f32 %v203, %v384
        %v386 = vpop.f32.mrb[0].mxu0
        %387 = vmatprep.mubr.f32.mxu0 0.0
        %388 = vmatmul.mubr.f32.gmra.mrb[0].mxu0 %v248
        %v389 = vpop.f32.mrb[0].mxu0
        %v390 = vadd.f32 %v203, %v389
        %v391 = vpop.f32.mrb[0].mxu0
        %392 = vmatprep.mubr.f32.mxu0 0.0
        %393 = vmatmul.mubr.f32.gmra.mrb[0].mxu0 %v251
        %v394 = vpop.f32.mrb[0].mxu0
        %v395 = vadd.f32 %v203, %v394
        %v396 = vpop.f32.mrb[0].mxu0
        %397 = vdwg.mxu0
        %v398 = vmax.f32 %v320, 0.0
        %v399 = vmax.f32 %v325, 0.0
        %v400 = vmax.f32 %v330, 0.0
        %v401 = vmax.f32 %v335, 0.0
        %v402 = vmax.f32 %v340, 0.0
        %v403 = vmax.f32 %v345, 0.0
        %v404 = vmax.f32 %v350, 0.0
        %v405 = vmax.f32 %v355, 0.0
        %v406 = vmax.f32 %v360, 0.0
        %v407 = vmax.f32 %v365, 0.0
        %v408 = vmax.f32 %v370, 0.0
        %v409 = vmax.f32 %v375, 0.0
        %v410 = vmax.f32 %v380, 0.0
        %v411 = vmax.f32 %v385, 0.0
        %v412 = vmax.f32 %v390, 0.0
        %v413 = vmax.f32 %v395, 0.0
        %v414 = vld [vmem:[%s1 + $0x8] sm:$0xff]
        %v415 = vld [vmem:[%s1 + $0x10] sm:$0xff]
        %v416 = vld [vmem:[%s1 + $0x18] sm:$0xff]
        %v417 = vld [vmem:[%s1 + $0x20] sm:$0xff]
        %v418 = vld [vmem:[%s1 + $0x39] sm:$0x1]
        %v419 = vlaneseq
        %v420 = vshrl.u32 %v419, 7
        %v421 = vsub.s32 0, %v420
        %v422 = vrot.slane %v418, %v421
        %vm423 = vcmask 261120
        %v425 = vsel %vm423, %v398, 0
        %v428 = vsel %vm423, %v399, 0
        %v431 = vsel %vm423, %v400, 0
        %v434 = vsel %vm423, %v401, 0
        %v437 = vsel %vm423, %v402, 0
        %v440 = vsel %vm423, %v403, 0
        %v443 = vsel %vm423, %v404, 0
        %v446 = vsel %vm423, %v405, 0
        %v449 = vsel %vm423, %v406, 0
        %v452 = vsel %vm423, %v407, 0
        %v455 = vsel %vm423, %v408, 0
        %v458 = vsel %vm423, %v409, 0
        %v461 = vsel %vm423, %v410, 0
        %v464 = vsel %vm423, %v411, 0
        %v467 = vsel %vm423, %v412, 0
        %v470 = vsel %vm423, %v413, 0
        %472 = vmatprep.subr.mxu0 0.0
        %473 = vmatpush1.msra.mxu0 %v414
        %474 = vmatprep.subr.mxu0 0.0
        %475 = vmatpush1.msra.mxu0 %v415
        %476 = vmatprep.subr.mxu0 0.0
        %477 = vmatpush1.msra.mxu0 %v416
        %478 = vmatprep.subr.mxu0 0.0
        %479 = vmatpush1.msra.mxu0 %v417
        %480 = vmatprep.subr.mxu0 0.0
        %481 = vmatpush1.msra.mxu0 0.0
        %482 = vmatprep.subr.mxu0 0.0
        %483 = vmatpush1.msra.mxu0 0.0
        %484 = vmatprep.subr.mxu0 0.0
        %485 = vmatpush1.msra.mxu0 0.0
        %486 = vmatprep.subr.mxu0 0.0
        %487 = vmatpush1.msra.mxu0 0.0
        %488 = vmatprep.subr.mxu0 0.0
        %489 = vmatpush1.msra.mxu0 0.0
        %490 = vmatprep.subr.mxu0 0.0
        %491 = vmatpush1.msra.mxu0 0.0
        %492 = vmatprep.subr.mxu0 0.0
        %493 = vmatpush1.msra.mxu0 0.0
        %494 = vmatprep.subr.mxu0 0.0
        %495 = vmatpush1.msra.mxu0 0.0
        %496 = vmatprep.subr.mxu0 0.0
        %497 = vmatpush1.msra.mxu0 0.0
        %498 = vmatprep.subr.mxu0 0.0
        %499 = vmatpush1.msra.mxu0 0.0
        %500 = vmatprep.subr.mxu0 0.0
        %501 = vmatpush1.msra.mxu0 0.0
        %502 = vmatprep.subr.mxu0 0.0
        %503 = vmatpush1.msra.mxu0 0.0
        %504 = vmatprep.subr.mxu0 0.0
        %505 = vmatpush1.msra.mxu0 0.0
        %506 = vmatprep.subr.mxu0 0.0
        %507 = vmatpush1.msra.mxu0 0.0
        %508 = vmatprep.subr.mxu0 0.0
        %509 = vmatpush1.msra.mxu0 0.0
        %510 = vmatprep.subr.mxu0 0.0
        %511 = vmatpush1.msra.mxu0 0.0
        %512 = vmatprep.subr.mxu0 0.0
        %513 = vmatpush1.msra.mxu0 0.0
        %514 = vmatprep.subr.mxu0 0.0
        %515 = vmatpush1.msra.mxu0 0.0
        %516 = vmatprep.subr.mxu0 0.0
        %517 = vmatpush1.msra.mxu0 0.0
        %518 = vmatprep.subr.mxu0 0.0
        %519 = vmatpush1.msra.mxu0 0.0
        %520 = vmatprep.subr.mxu0 0.0
        %521 = vmatpush1.msra.mxu0 0.0
        %522 = vmatprep.subr.mxu0 0.0
        %523 = vmatpush1.msra.mxu0 0.0
        %524 = vmatprep.subr.mxu0 0.0
        %525 = vmatpush1.msra.mxu0 0.0
        %526 = vmatprep.subr.mxu0 0.0
        %527 = vmatpush1.msra.mxu0 0.0
        %528 = vmatprep.subr.mxu0 0.0
        %529 = vmatpush1.msra.mxu0 0.0
        %530 = vmatprep.subr.mxu0 0.0
        %531 = vmatpush1.msra.mxu0 0.0
        %532 = vmatprep.subr.mxu0 0.0
        %533 = vmatpush1.msra.mxu0 0.0
        %534 = vmatprep.subr.mxu0 0.0
        %535 = vmatpush1.msra.mxu0 0.0
        %536 = vmatprep.mubr.f32.mxu0 0.0
        %537 = vmatmul.mubr.f32.gmra.mrb[0].mxu0 %v425
        %v538 = vpop.f32.mrb[0].mxu0
        %v539 = vadd.f32 %v422, %v538
        %v540 = vpop.f32.mrb[0].mxu0
        %541 = vmatprep.mubr.f32.mxu0 0.0
        %542 = vmatmul.mubr.f32.gmra.mrb[0].mxu0 %v428
        %v543 = vpop.f32.mrb[0].mxu0
        %v544 = vadd.f32 %v422, %v543
        %v545 = vpop.f32.mrb[0].mxu0
        %546 = vmatprep.mubr.f32.mxu0 0.0
        %547 = vmatmul.mubr.f32.gmra.mrb[0].mxu0 %v431
        %v548 = vpop.f32.mrb[0].mxu0
        %v549 = vadd.f32 %v422, %v548
        %v550 = vpop.f32.mrb[0].mxu0
        %551 = vmatprep.mubr.f32.mxu0 0.0
        %552 = vmatmul.mubr.f32.gmra.mrb[0].mxu0 %v434
        %v553 = vpop.f32.mrb[0].mxu0
        %v554 = vadd.f32 %v422, %v553
        %v555 = vpop.f32.mrb[0].mxu0
        %556 = vmatprep.mubr.f32.mxu0 0.0
        %557 = vmatmul.mubr.f32.gmra.mrb[0].mxu0 %v437
        %v558 = vpop.f32.mrb[0].mxu0
        %v559 = vadd.f32 %v422, %v558
        %v560 = vpop.f32.mrb[0].mxu0
        %561 = vmatprep.mubr.f32.mxu0 0.0
        %562 = vmatmul.mubr.f32.gmra.mrb[0].mxu0 %v440
        %v563 = vpop.f32.mrb[0].mxu0
        %v564 = vadd.f32 %v422, %v563
        %v565 = vpop.f32.mrb[0].mxu0
        %566 = vmatprep.mubr.f32.mxu0 0.0
        %567 = vmatmul.mubr.f32.gmra.mrb[0].mxu0 %v443
        %v568 = vpop.f32.mrb[0].mxu0
        %v569 = vadd.f32 %v422, %v568
        %v570 = vpop.f32.mrb[0].mxu0
        %571 = vmatprep.mubr.f32.mxu0 0.0
        %572 = vmatmul.mubr.f32.gmra.mrb[0].mxu0 %v446
        %v573 = vpop.f32.mrb[0].mxu0
        %v574 = vadd.f32 %v422, %v573
        %v575 = vpop.f32.mrb[0].mxu0
        %576 = vmatprep.mubr.f32.mxu0 0.0
        %577 = vmatmul.mubr.f32.gmra.mrb[0].mxu0 %v449
        %v578 = vpop.f32.mrb[0].mxu0
        %v579 = vadd.f32 %v422, %v578
        %v580 = vpop.f32.mrb[0].mxu0
        %581 = vmatprep.mubr.f32.mxu0 0.0
        %582 = vmatmul.mubr.f32.gmra.mrb[0].mxu0 %v452
        %v583 = vpop.f32.mrb[0].mxu0
        %v584 = vadd.f32 %v422, %v583
        %v585 = vpop.f32.mrb[0].mxu0
        %586 = vmatprep.mubr.f32.mxu0 0.0
        %587 = vmatmul.mubr.f32.gmra.mrb[0].mxu0 %v455
        %v588 = vpop.f32.mrb[0].mxu0
        %v589 = vadd.f32 %v422, %v588
        %v590 = vpop.f32.mrb[0].mxu0
        %591 = vmatprep.mubr.f32.mxu0 0.0
        %592 = vmatmul.mubr.f32.gmra.mrb[0].mxu0 %v458
        %v593 = vpop.f32.mrb[0].mxu0
        %v594 = vadd.f32 %v422, %v593
        %v595 = vpop.f32.mrb[0].mxu0
        %596 = vmatprep.mubr.f32.mxu0 0.0
        %597 = vmatmul.mubr.f32.gmra.mrb[0].mxu0 %v461
        %v598 = vpop.f32.mrb[0].mxu0
        %v599 = vadd.f32 %v422, %v598
        %v600 = vpop.f32.mrb[0].mxu0
        %601 = vmatprep.mubr.f32.mxu0 0.0
        %602 = vmatmul.mubr.f32.gmra.mrb[0].mxu0 %v464
        %v603 = vpop.f32.mrb[0].mxu0
        %v604 = vadd.f32 %v422, %v603
        %v605 = vpop.f32.mrb[0].mxu0
        %606 = vmatprep.mubr.f32.mxu0 0.0
        %607 = vmatmul.mubr.f32.gmra.mrb[0].mxu0 %v467
        %v608 = vpop.f32.mrb[0].mxu0
        %v609 = vadd.f32 %v422, %v608
        %v610 = vpop.f32.mrb[0].mxu0
        %611 = vmatprep.mubr.f32.mxu0 0.0
        %612 = vmatmul.mubr.f32.gmra.mrb[0].mxu0 %v470
        %v613 = vpop.f32.mrb[0].mxu0
        %v614 = vadd.f32 %v422, %v613
        %v615 = vpop.f32.mrb[0].mxu0
        %616 = vdwg.mxu0
        %v617 = vmax.f32 %v539, 0.0
        %v618 = vmax.f32 %v544, 0.0
        %v619 = vmax.f32 %v549, 0.0
        %v620 = vmax.f32 %v554, 0.0
        %v621 = vmax.f32 %v559, 0.0
        %v622 = vmax.f32 %v564, 0.0
        %v623 = vmax.f32 %v569, 0.0
        %v624 = vmax.f32 %v574, 0.0
        %v625 = vmax.f32 %v579, 0.0
        %v626 = vmax.f32 %v584, 0.0
        %v627 = vmax.f32 %v589, 0.0
        %v628 = vmax.f32 %v594, 0.0
        %v629 = vmax.f32 %v599, 0.0
        %v630 = vmax.f32 %v604, 0.0
        %v631 = vmax.f32 %v609, 0.0
        %v632 = vmax.f32 %v614, 0.0
        %v633 = vld [vmem:[%s1 + $0x28] sm:$0xff]
        %v634 = vld [vmem:[%s1 + $0x30] sm:$0xff]
        %v635 = vld [vmem:[%s1 + $0x3a] sm:$0x1]
        %v636 = vlaneseq
        %v637 = vshrl.u32 %v636, 7
        %v638 = vsub.s32 0, %v637
        %v639 = vrot.slane %v635, %v638
        %vm640 = vcmask 130048
        %v642 = vsel %vm640, %v617, 0
        %v645 = vsel %vm640, %v618, 0
        %v648 = vsel %vm640, %v619, 0
        %v651 = vsel %vm640, %v620, 0
        %v654 = vsel %vm640, %v621, 0
        %v657 = vsel %vm640, %v622, 0
        %v660 = vsel %vm640, %v623, 0
        %v663 = vsel %vm640, %v624, 0
        %v666 = vsel %vm640, %v625, 0
        %v669 = vsel %vm640, %v626, 0
        %v672 = vsel %vm640, %v627, 0
        %v675 = vsel %vm640, %v628, 0
        %v678 = vsel %vm640, %v629, 0
        %v681 = vsel %vm640, %v630, 0
        %v684 = vsel %vm640, %v631, 0
        %v687 = vsel %vm640, %v632, 0
        %689 = vmatprep.subr.mxu0 0.0
        %690 = vmatpush1.msra.mxu0 %v633
        %691 = vmatprep.subr.mxu0 0.0
        %692 = vmatpush1.msra.mxu0 %v634
        %693 = vmatprep.subr.mxu0 0.0
        %694 = vmatpush1.msra.mxu0 0.0
        %695 = vmatprep.subr.mxu0 0.0
        %696 = vmatpush1.msra.mxu0 0.0
        %697 = vmatprep.subr.mxu0 0.0
        %698 = vmatpush1.msra.mxu0 0.0
        %699 = vmatprep.subr.mxu0 0.0
        %700 = vmatpush1.msra.mxu0 0.0
        %701 = vmatprep.subr.mxu0 0.0
        %702 = vmatpush1.msra.mxu0 0.0
        %703 = vmatprep.subr.mxu0 0.0
        %704 = vmatpush1.msra.mxu0 0.0
        %705 = vmatprep.subr.mxu0 0.0
        %706 = vmatpush1.msra.mxu0 0.0
        %707 = vmatprep.subr.mxu0 0.0
        %708 = vmatpush1.msra.mxu0 0.0
        %709 = vmatprep.subr.mxu0 0.0
        %710 = vmatpush1.msra.mxu0 0.0
        %711 = vmatprep.subr.mxu0 0.0
        %712 = vmatpush1.msra.mxu0 0.0
        %713 = vmatprep.subr.mxu0 0.0
        %714 = vmatpush1.msra.mxu0 0.0
        %715 = vmatprep.subr.mxu0 0.0
        %716 = vmatpush1.msra.mxu0 0.0
        %717 = vmatprep.subr.mxu0 0.0
        %718 = vmatpush1.msra.mxu0 0.0
        %719 = vmatprep.subr.mxu0 0.0
        %720 = vmatpush1.msra.mxu0 0.0
        %721 = vmatprep.subr.mxu0 0.0
        %722 = vmatpush1.msra.mxu0 0.0
        %723 = vmatprep.subr.mxu0 0.0
        %724 = vmatpush1.msra.mxu0 0.0
        %725 = vmatprep.subr.mxu0 0.0
        %726 = vmatpush1.msra.mxu0 0.0
        %727 = vmatprep.subr.mxu0 0.0
        %728 = vmatpush1.msra.mxu0 0.0
        %729 = vmatprep.subr.mxu0 0.0
        %730 = vmatpush1.msra.mxu0 0.0
        %731 = vmatprep.subr.mxu0 0.0
        %732 = vmatpush1.msra.mxu0 0.0
        %733 = vmatprep.subr.mxu0 0.0
        %734 = vmatpush1.msra.mxu0 0.0
        %735 = vmatprep.subr.mxu0 0.0
        %736 = vmatpush1.msra.mxu0 0.0
        %737 = vmatprep.subr.mxu0 0.0
        %738 = vmatpush1.msra.mxu0 0.0
        %739 = vmatprep.subr.mxu0 0.0
        %740 = vmatpush1.msra.mxu0 0.0
        %741 = vmatprep.subr.mxu0 0.0
        %742 = vmatpush1.msra.mxu0 0.0
        %743 = vmatprep.subr.mxu0 0.0
        %744 = vmatpush1.msra.mxu0 0.0
        %745 = vmatprep.subr.mxu0 0.0
        %746 = vmatpush1.msra.mxu0 0.0
        %747 = vmatprep.subr.mxu0 0.0
        %748 = vmatpush1.msra.mxu0 0.0
        %749 = vmatprep.subr.mxu0 0.0
        %750 = vmatpush1.msra.mxu0 0.0
        %751 = vmatprep.subr.mxu0 0.0
        %752 = vmatpush1.msra.mxu0 0.0
        %753 = vmatprep.mubr.f32.mxu0 0.0
        %754 = vmatmul.mubr.f32.gmra.mrb[0].mxu0 %v642
        %v755 = vpop.f32.mrb[0].mxu0
        %v756 = vadd.f32 %v639, %v755
        %v757 = vpop.f32.mrb[0].mxu0
        %758 = vmatprep.mubr.f32.mxu0 0.0
        %759 = vmatmul.mubr.f32.gmra.mrb[0].mxu0 %v645
        %v760 = vpop.f32.mrb[0].mxu0
        %v761 = vadd.f32 %v639, %v760
        %v762 = vpop.f32.mrb[0].mxu0
        %763 = vmatprep.mubr.f32.mxu0 0.0
        %764 = vmatmul.mubr.f32.gmra.mrb[0].mxu0 %v648
        %v765 = vpop.f32.mrb[0].mxu0
        %v766 = vadd.f32 %v639, %v765
        %v767 = vpop.f32.mrb[0].mxu0
        %768 = vmatprep.mubr.f32.mxu0 0.0
        %769 = vmatmul.mubr.f32.gmra.mrb[0].mxu0 %v651
        %v770 = vpop.f32.mrb[0].mxu0
        %v771 = vadd.f32 %v639, %v770
        %v772 = vpop.f32.mrb[0].mxu0
        %773 = vmatprep.mubr.f32.mxu0 0.0
        %774 = vmatmul.mubr.f32.gmra.mrb[0].mxu0 %v654
        %v775 = vpop.f32.mrb[0].mxu0
        %v776 = vadd.f32 %v639, %v775
        %v777 = vpop.f32.mrb[0].mxu0
        %778 = vmatprep.mubr.f32.mxu0 0.0
        %779 = vmatmul.mubr.f32.gmra.mrb[0].mxu0 %v657
        %v780 = vpop.f32.mrb[0].mxu0
        %v781 = vadd.f32 %v639, %v780
        %v782 = vpop.f32.mrb[0].mxu0
        %783 = vmatprep.mubr.f32.mxu0 0.0
        %784 = vmatmul.mubr.f32.gmra.mrb[0].mxu0 %v660
        %v785 = vpop.f32.mrb[0].mxu0
        %v786 = vadd.f32 %v639, %v785
        %v787 = vpop.f32.mrb[0].mxu0
        %788 = vmatprep.mubr.f32.mxu0 0.0
        %789 = vmatmul.mubr.f32.gmra.mrb[0].mxu0 %v663
        %v790 = vpop.f32.mrb[0].mxu0
        %v791 = vadd.f32 %v639, %v790
        %v792 = vpop.f32.mrb[0].mxu0
        %793 = vmatprep.mubr.f32.mxu0 0.0
        %794 = vmatmul.mubr.f32.gmra.mrb[0].mxu0 %v666
        %v795 = vpop.f32.mrb[0].mxu0
        %v796 = vadd.f32 %v639, %v795
        %v797 = vpop.f32.mrb[0].mxu0
        %798 = vmatprep.mubr.f32.mxu0 0.0
        %799 = vmatmul.mubr.f32.gmra.mrb[0].mxu0 %v669
        %v800 = vpop.f32.mrb[0].mxu0
        %v801 = vadd.f32 %v639, %v800
        %v802 = vpop.f32.mrb[0].mxu0
        %803 = vmatprep.mubr.f32.mxu0 0.0
        %804 = vmatmul.mubr.f32.gmra.mrb[0].mxu0 %v672
        %v805 = vpop.f32.mrb[0].mxu0
        %v806 = vadd.f32 %v639, %v805
        %v807 = vpop.f32.mrb[0].mxu0
        %808 = vmatprep.mubr.f32.mxu0 0.0
        %809 = vmatmul.mubr.f32.gmra.mrb[0].mxu0 %v675
        %v810 = vpop.f32.mrb[0].mxu0
        %v811 = vadd.f32 %v639, %v810
        %v812 = vpop.f32.mrb[0].mxu0
        %813 = vmatprep.mubr.f32.mxu0 0.0
        %814 = vmatmul.mubr.f32.gmra.mrb[0].mxu0 %v678
        %v815 = vpop.f32.mrb[0].mxu0
        %v816 = vadd.f32 %v639, %v815
        %v817 = vpop.f32.mrb[0].mxu0
        %818 = vmatprep.mubr.f32.mxu0 0.0
        %819 = vmatmul.mubr.f32.gmra.mrb[0].mxu0 %v681
        %v820 = vpop.f32.mrb[0].mxu0
        %v821 = vadd.f32 %v639, %v820
        %v822 = vpop.f32.mrb[0].mxu0
        %823 = vmatprep.mubr.f32.mxu0 0.0
        %824 = vmatmul.mubr.f32.gmra.mrb[0].mxu0 %v684
        %v825 = vpop.f32.mrb[0].mxu0
        %v826 = vadd.f32 %v639, %v825
        %v827 = vpop.f32.mrb[0].mxu0
        %828 = vmatprep.mubr.f32.mxu0 0.0
        %829 = vmatmul.mubr.f32.gmra.mrb[0].mxu0 %v687
        %v830 = vpop.f32.mrb[0].mxu0
        %v831 = vadd.f32 %v639, %v830
        %v832 = vpop.f32.mrb[0].mxu0
        %833 = vdwg.mxu0
        %vm834 = vcmask 31744
        %v835 = vsel %vm834, %v756, -inf
        %836 = vmax.xlane.f32.xlu0 %v835
        %v837 = vpop.xlane.xlu0 %836
        %v838 = vsel %vm834, %v761, -inf
        %839 = vmax.xlane.f32.xlu0 %v838
        %v840 = vpop.xlane.xlu0 %839
        %v841 = vsel %vm834, %v766, -inf
        %842 = vmax.xlane.f32.xlu0 %v841
        %v843 = vpop.xlane.xlu0 %842
        %v844 = vsel %vm834, %v771, -inf
        %845 = vmax.xlane.f32.xlu0 %v844
        %v846 = vpop.xlane.xlu0 %845
        %v847 = vsel %vm834, %v776, -inf
        %848 = vmax.xlane.f32.xlu0 %v847
        %v849 = vpop.xlane.xlu0 %848
        %v850 = vsel %vm834, %v781, -inf
        %851 = vmax.xlane.f32.xlu0 %v850
        %v852 = vpop.xlane.xlu0 %851
        %v853 = vsel %vm834, %v786, -inf
        %854 = vmax.xlane.f32.xlu0 %v853
        %v855 = vpop.xlane.xlu0 %854
        %v856 = vsel %vm834, %v791, -inf
        %857 = vmax.xlane.f32.xlu0 %v856
        %v858 = vpop.xlane.xlu0 %857
        %v859 = vsel %vm834, %v796, -inf
        %860 = vmax.xlane.f32.xlu0 %v859
        %v861 = vpop.xlane.xlu0 %860
        %v862 = vsel %vm834, %v801, -inf
        %863 = vmax.xlane.f32.xlu0 %v862
        %v864 = vpop.xlane.xlu0 %863
        %v865 = vsel %vm834, %v806, -inf
        %866 = vmax.xlane.f32.xlu0 %v865
        %v867 = vpop.xlane.xlu0 %866
        %v868 = vsel %vm834, %v811, -inf
        %869 = vmax.xlane.f32.xlu0 %v868
        %v870 = vpop.xlane.xlu0 %869
        %v871 = vsel %vm834, %v816, -inf
        %872 = vmax.xlane.f32.xlu0 %v871
        %v873 = vpop.xlane.xlu0 %872
        %v874 = vsel %vm834, %v821, -inf
        %875 = vmax.xlane.f32.xlu0 %v874
        %v876 = vpop.xlane.xlu0 %875
        %v877 = vsel %vm834, %v826, -inf
        %878 = vmax.xlane.f32.xlu0 %v877
        %v879 = vpop.xlane.xlu0 %878
        %v880 = vsel %vm834, %v831, -inf
        %881 = vmax.xlane.f32.xlu0 %v880
        %v882 = vpop.xlane.xlu0 %881
        %v883 = vsub.f32 %v756, %v837
        %v884 = vsub.f32 %v761, %v840
        %v885 = vsub.f32 %v766, %v843
        %v886 = vsub.f32 %v771, %v846
        %v887 = vsub.f32 %v776, %v849
        %v888 = vsub.f32 %v781, %v852
        %v889 = vsub.f32 %v786, %v855
        %v890 = vsub.f32 %v791, %v858
        %v891 = vsub.f32 %v796, %v861
        %v892 = vsub.f32 %v801, %v864
        %v893 = vsub.f32 %v806, %v867
        %v894 = vsub.f32 %v811, %v870
        %v895 = vsub.f32 %v816, %v873
        %v896 = vsub.f32 %v821, %v876
        %v897 = vsub.f32 %v826, %v879
        %v898 = vsub.f32 %v831, %v882
        %v899 = vmul.f32 %v883, 1.442695
        %v900 = vpow.pop %v899
        %v901 = vmul.f32 %v884, 1.442695
        %v902 = vpow.pop %v901
        %v903 = vmul.f32 %v885, 1.442695
        %v904 = vpow.pop %v903
        %v905 = vmul.f32 %v886, 1.442695
        %v906 = vpow.pop %v905
        %v907 = vmul.f32 %v887, 1.442695
        %v908 = vpow.pop %v907
        %v909 = vmul.f32 %v888, 1.442695
        %v910 = vpow.pop %v909
        %v911 = vmul.f32 %v889, 1.442695
        %v912 = vpow.pop %v911
        %v913 = vmul.f32 %v890, 1.442695
        %v914 = vpow.pop %v913
        %v915 = vmul.f32 %v891, 1.442695
        %v916 = vpow.pop %v915
        %v917 = vmul.f32 %v892, 1.442695
        %v918 = vpow.pop %v917
        %v919 = vmul.f32 %v893, 1.442695
        %v920 = vpow.pop %v919
        %v921 = vmul.f32 %v894, 1.442695
        %v922 = vpow.pop %v921
        %v923 = vmul.f32 %v895, 1.442695
        %v924 = vpow.pop %v923
        %v925 = vmul.f32 %v896, 1.442695
        %v926 = vpow.pop %v925
        %v927 = vmul.f32 %v897, 1.442695
        %v928 = vpow.pop %v927
        %v929 = vmul.f32 %v898, 1.442695
        %v930 = vpow.pop %v929
        %v931 = vsel %vm834, %v900, 0.0
        %932 = vadd.xlane.f32.xlu0 %v931
        %v933 = vpop.xlane.xlu0 %932
        %v934 = vsel %vm834, %v902, 0.0
        %935 = vadd.xlane.f32.xlu0 %v934
        %v936 = vpop.xlane.xlu0 %935
        %v937 = vsel %vm834, %v904, 0.0
        %938 = vadd.xlane.f32.xlu0 %v937
        %v939 = vpop.xlane.xlu0 %938
        %v940 = vsel %vm834, %v906, 0.0
        %941 = vadd.xlane.f32.xlu0 %v940
        %v942 = vpop.xlane.xlu0 %941
        %v943 = vsel %vm834, %v908, 0.0
        %944 = vadd.xlane.f32.xlu0 %v943
        %v945 = vpop.xlane.xlu0 %944
        %v946 = vsel %vm834, %v910, 0.0
        %947 = vadd.xlane.f32.xlu0 %v946
        %v948 = vpop.xlane.xlu0 %947
        %v949 = vsel %vm834, %v912, 0.0
        %950 = vadd.xlane.f32.xlu0 %v949
        %v951 = vpop.xlane.xlu0 %950
        %v952 = vsel %vm834, %v914, 0.0
        %953 = vadd.xlane.f32.xlu0 %v952
        %v954 = vpop.xlane.xlu0 %953
        %v955 = vsel %vm834, %v916, 0.0
        %956 = vadd.xlane.f32.xlu0 %v955
        %v957 = vpop.xlane.xlu0 %956
        %v958 = vsel %vm834, %v918, 0.0
        %959 = vadd.xlane.f32.xlu0 %v958
        %v960 = vpop.xlane.xlu0 %959
        %v961 = vsel %vm834, %v920, 0.0
        %962 = vadd.xlane.f32.xlu0 %v961
        %v963 = vpop.xlane.xlu0 %962
        %v964 = vsel %vm834, %v922, 0.0
        %965 = vadd.xlane.f32.xlu0 %v964
        %v966 = vpop.xlane.xlu0 %965
        %v967 = vsel %vm834, %v924, 0.0
        %968 = vadd.xlane.f32.xlu0 %v967
        %v969 = vpop.xlane.xlu0 %968
        %v970 = vsel %vm834, %v926, 0.0
        %971 = vadd.xlane.f32.xlu0 %v970
        %v972 = vpop.xlane.xlu0 %971
        %v973 = vsel %vm834, %v928, 0.0
        %974 = vadd.xlane.f32.xlu0 %v973
        %v975 = vpop.xlane.xlu0 %974
        %v976 = vsel %vm834, %v930, 0.0
        %977 = vadd.xlane.f32.xlu0 %v976
        %v978 = vpop.xlane.xlu0 %977
        %v979 = vrcp.pop %v933
        %v980 = vmul.f32 %v900, %v979
        %v981 = vrcp.pop %v936
        %v982 = vmul.f32 %v902, %v981
        %v983 = vrcp.pop %v939
        %v984 = vmul.f32 %v904, %v983
        %v985 = vrcp.pop %v942
        %v986 = vmul.f32 %v906, %v985
        %v987 = vrcp.pop %v945
        %v988 = vmul.f32 %v908, %v987
        %v989 = vrcp.pop %v948
        %v990 = vmul.f32 %v910, %v989
        %v991 = vrcp.pop %v951
        %v992 = vmul.f32 %v912, %v991
        %v993 = vrcp.pop %v954
        %v994 = vmul.f32 %v914, %v993
        %v995 = vrcp.pop %v957
        %v996 = vmul.f32 %v916, %v995
        %v997 = vrcp.pop %v960
        %v998 = vmul.f32 %v918, %v997
        %v999 = vrcp.pop %v963
        %v1000 = vmul.f32 %v920, %v999
        %v1001 = vrcp.pop %v966
        %v1002 = vmul.f32 %v922, %v1001
        %v1003 = vrcp.pop %v969
        %v1004 = vmul.f32 %v924, %v1003
        %v1005 = vrcp.pop %v972
        %v1006 = vmul.f32 %v926, %v1005
        %v1007 = vrcp.pop %v975
        %v1008 = vmul.f32 %v928, %v1007
        %v1009 = vrcp.pop %v978
        %v1010 = vmul.f32 %v930, %v1009
        %1011 = vst.msk [vmem:[%s145] sm:$0xff] %vm834, %v980
        %1012 = vst.msk [vmem:[%s145 + $0x8] sm:$0xff] %vm834, %v982
        %1013 = vst.msk [vmem:[%s145 + $0x10] sm:$0xff] %vm834, %v984
        %1014 = vst.msk [vmem:[%s145 + $0x18] sm:$0xff] %vm834, %v986
        %1015 = vst.msk [vmem:[%s145 + $0x20] sm:$0xff] %vm834, %v988
        %1016 = vst.msk [vmem:[%s145 + $0x28] sm:$0xff] %vm834, %v990
        %1017 = vst.msk [vmem:[%s145 + $0x30] sm:$0xff] %vm834, %v992
        %1018 = vst.msk [vmem:[%s145 + $0x38] sm:$0xff] %vm834, %v994
        %1019 = vst.msk [vmem:[%s145 + $0x40] sm:$0xff] %vm834, %v996
        %1020 = vst.msk [vmem:[%s145 + $0x48] sm:$0xff] %vm834, %v998
        %1021 = vst.msk [vmem:[%s145 + $0x50] sm:$0xff] %vm834, %v1000
        %1022 = vst.msk [vmem:[%s145 + $0x58] sm:$0xff] %vm834, %v1002
        %1023 = vst.msk [vmem:[%s145 + $0x60] sm:$0xff] %vm834, %v1004
        %1024 = vst.msk [vmem:[%s145 + $0x68] sm:$0xff] %vm834, %v1006
        %1025 = vst.msk [vmem:[%s145 + $0x70] sm:$0xff] %vm834, %v1008
        %1026 = vst.msk [vmem:[%s145 + $0x78] sm:$0xff] %vm834, %v1010
        %s1027 = sand.u32 %s68, 1
        %s1028 = sand.u32 %s68, 1
        %s1029 = smul.addr %s1028, 128
        %s1030 = scalar_lea.vmem [#allocation2], %s1029
        // Predicated region
        $region29: #{_policy_forward_impl.1} parent=27 // pred_check
          %p1031 = pneg %p78
        $region30: #{_policy_forward_impl.1} parent=27 // pred_check_branch
          %1033 = sbr.rel (%p1031) target = $region32
        $region31: #{_policy_forward_impl.1} parent=27 // pred_region
          %s1034 = smul.u32 16, %s13
          %s1035 = ssub.s32 125, %s1034
          %p1036 = scmp.lt.s32.totalorder %s1035, 16
          %s1037 = scalar_select %p1036, %s1035, 16
          %s1038 = smul.u32 128, %s1037
          %p1039 = scmp.ne.s32.totalorder 0, %s1038
          %s1040 = smul.addr %s1034, 8
          %s1041 = scalar_lea.vmem %s2, %s1040
          // Predicated region
          $region33: #{_policy_forward_impl.1} parent=31 // pred_check
            %p1042 = pneg %p1039
          $region34: #{_policy_forward_impl.1} parent=31 // pred_check_branch
            %1044 = sbr.rel (%p1042) target = $region36
          $region35: #{_policy_forward_impl.1} parent=31 // pred_region
            // Predicated region
            $region37: #{_policy_forward_impl.1} parent=35 // pred_check
              _
            $region38: #{_policy_forward_impl.1} parent=35 // pred_check_branch
              %1046 = sbr.rel (0) target = $region40
            $region39: #{_policy_forward_impl.1} parent=35 // pred_region
              // Predicated region
              $region59: #{_policy_forward_impl.1} parent=39 // pred_check
                _
              $region60: #{_policy_forward_impl.1} parent=39 // pred_check_branch
                %1125 = sbr.rel (0) target = $region62
              $region61: #{_policy_forward_impl.1} parent=39 // pred_region
                %s1126 = sshrl.u32 %s1037, 4
                // While loop
                $region63: #{_policy_forward_impl.1} parent=61 // loop_pre_header
                  _
                $region64: #{_policy_forward_impl.1} parent=61 // loop_header
                  %s1128 = sphi 0, %s1130
                  %p1129 = scmp.ge.s32.totalorder %s1128, %s1126
                  %s1133 = sphi 0, %s1170
                  %s1134 = sphi %s1030, %s1173
                  %s1135 = sphi %s1041, %s1174
                $region65: #{_policy_forward_impl.1} parent=61 // loop_header_branch
                  %1132 = sbr.rel (%p1129) target = $region69
                $region66: #{_policy_forward_impl.1} parent=61 // loop_body
                  %v1136 = vld [vmem:[%s1134] sm:$0xff]
                  %1137 = vst [vmem:[%s1135] sm:$0xff] %v1136
                  %v1138 = vld [vmem:[%s1134 + $0x8] sm:$0xff]
                  %1139 = vst [vmem:[%s1135 + $0x8] sm:$0xff] %v1138
                  %v1140 = vld [vmem:[%s1134 + $0x10] sm:$0xff]
                  %1141 = vst [vmem:[%s1135 + $0x10] sm:$0xff] %v1140
                  %v1142 = vld [vmem:[%s1134 + $0x18] sm:$0xff]
                  %1143 = vst [vmem:[%s1135 + $0x18] sm:$0xff] %v1142
                  %v1144 = vld [vmem:[%s1134 + $0x20] sm:$0xff]
                  %1145 = vst [vmem:[%s1135 + $0x20] sm:$0xff] %v1144
                  %v1146 = vld [vmem:[%s1134 + $0x28] sm:$0xff]
                  %1147 = vst [vmem:[%s1135 + $0x28] sm:$0xff] %v1146
                  %v1148 = vld [vmem:[%s1134 + $0x30] sm:$0xff]
                  %1149 = vst [vmem:[%s1135 + $0x30] sm:$0xff] %v1148
                  %v1150 = vld [vmem:[%s1134 + $0x38] sm:$0xff]
                  %1151 = vst [vmem:[%s1135 + $0x38] sm:$0xff] %v1150
                  %v1152 = vld [vmem:[%s1134 + $0x40] sm:$0xff]
                  %1153 = vst [vmem:[%s1135 + $0x40] sm:$0xff] %v1152
                  %v1154 = vld [vmem:[%s1134 + $0x48] sm:$0xff]
                  %1155 = vst [vmem:[%s1135 + $0x48] sm:$0xff] %v1154
                  %v1156 = vld [vmem:[%s1134 + $0x50] sm:$0xff]
                  %1157 = vst [vmem:[%s1135 + $0x50] sm:$0xff] %v1156
                  %v1158 = vld [vmem:[%s1134 + $0x58] sm:$0xff]
                  %1159 = vst [vmem:[%s1135 + $0x58] sm:$0xff] %v1158
                  %v1160 = vld [vmem:[%s1134 + $0x60] sm:$0xff]
                  %1161 = vst [vmem:[%s1135 + $0x60] sm:$0xff] %v1160
                  %v1162 = vld [vmem:[%s1134 + $0x68] sm:$0xff]
                  %1163 = vst [vmem:[%s1135 + $0x68] sm:$0xff] %v1162
                  %v1164 = vld [vmem:[%s1134 + $0x70] sm:$0xff]
                  %1165 = vst [vmem:[%s1135 + $0x70] sm:$0xff] %v1164
                  %v1166 = vld [vmem:[%s1134 + $0x78] sm:$0xff]
                  %1167 = vst [vmem:[%s1135 + $0x78] sm:$0xff] %v1166
                  %s1168 = sadd.s32 1, %s1133
                  %p1169 = scmp.ge.s32.totalorder %s1168, %s1126
                  %s1170 = scalar_select %p1169, 0, %s1168
                  %s1171 = smul.u32 %s1170, 128
                  %s1172 = smul.u32 %s1170, 128
                  %s1173 = scalar_lea.vmem %s1030, %s1171 [#allocation2]
                  %s1174 = scalar_lea.vmem %s1041, %s1172
                $region67: #{_policy_forward_impl.1} parent=61 // loop_footer
                  %s1130 = sadd.s32 %s1128, 1
                $region68: #{_policy_forward_impl.1} parent=61 // loop_footer_branch
                  %1127 = sbr.rel target = $region64
                $region69: #{_policy_forward_impl.1} parent=61 // loop_exit
                  _
                %s1175 = sshrl.u32 %s1037, 4
                %s1176 = sand.u32 %s1037, 15
                %s1177 = smul.u32 %s1175, 16
                %s1178 = smul.u32 8, %s1177
                %s1179 = scalar_lea.vmem %s1030, %s1178 [#allocation2]
                %s1180 = smul.u32 8, %s1177
                %s1181 = scalar_lea.vmem %s1041, %s1180
                // While loop
                $region70: #{_policy_forward_impl.1} parent=61 // loop_pre_header
                  _
                $region71: #{_policy_forward_impl.1} parent=61 // loop_header
                  %s1183 = sphi 0, %s1185
                  %p1184 = scmp.ge.s32.totalorder %s1183, %s1176
                  %s1188 = sphi 0, %s1195
                  %s1189 = sphi %s1179, %s1198
                  %s1190 = sphi %s1181, %s1199
                $region72: #{_policy_forward_impl.1} parent=61 // loop_header_branch
                  %1187 = sbr.rel (%p1184) target = $region76
                $region73: #{_policy_forward_impl.1} parent=61 // loop_body
                  %v1191 = vld [vmem:[%s1189] sm:$0xff]
                  %1192 = vst [vmem:[%s1190] sm:$0xff] %v1191
                  %s1193 = sadd.s32 1, %s1188
                  %p1194 = scmp.ge.s32.totalorder %s1193, %s1176
                  %s1195 = scalar_select %p1194, 0, %s1193
                  %s1196 = smul.u32 %s1195, 8
                  %s1197 = smul.u32 %s1195, 8
                  %s1198 = scalar_lea.vmem %s1179, %s1196 [#allocation2]
                  %s1199 = scalar_lea.vmem %s1181, %s1197
                $region74: #{_policy_forward_impl.1} parent=61 // loop_footer
                  %s1185 = sadd.s32 %s1183, 1
                $region75: #{_policy_forward_impl.1} parent=61 // loop_footer_branch
                  %1182 = sbr.rel target = $region71
                $region76: #{_policy_forward_impl.1} parent=61 // loop_exit
                  _
              $region62: #{_policy_forward_impl.1} parent=39 // pred_fallthru
                _
              // Predicated region
              $region77: #{_policy_forward_impl.1} parent=39 // pred_check
                _
              $region78: #{_policy_forward_impl.1} parent=39 // pred_check_branch
                %1201 = sbr.rel target = $region80
              $region79: #{_policy_forward_impl.1} parent=39 // pred_region
                _
              $region80: #{_policy_forward_impl.1} parent=39 // pred_fallthru
                _
            $region40: #{_policy_forward_impl.1} parent=35 // pred_fallthru
              _
            // Predicated region
            $region41: #{_policy_forward_impl.1} parent=35 // pred_check
              _
            $region42: #{_policy_forward_impl.1} parent=35 // pred_check_branch
              %1048 = sbr.rel target = $region44
            $region43: #{_policy_forward_impl.1} parent=35 // pred_region
              %s1050 = sshrl.u32 %s1037, 4
              // While loop
              $region45: #{_policy_forward_impl.1} parent=43 // loop_pre_header
                _
              $region46: #{_policy_forward_impl.1} parent=43 // loop_header
                %s1052 = sphi 0, %s1054
                %p1053 = scmp.ge.s32.totalorder %s1052, %s1050
                %s1057 = sphi 0, %s1094
                %s1058 = sphi %s1030, %s1097
                %s1059 = sphi %s1041, %s1098
              $region47: #{_policy_forward_impl.1} parent=43 // loop_header_branch
                %1056 = sbr.rel (%p1053) target = $region51
              $region48: #{_policy_forward_impl.1} parent=43 // loop_body
                %v1060 = vld [vmem:[%s1058] sm:$0xff]
                %1061 = vst [vmem:[%s1059] sm:$0xff] %v1060
                %v1062 = vld [vmem:[%s1058 + $0x8] sm:$0xff]
                %1063 = vst [vmem:[%s1059 + $0x8] sm:$0xff] %v1062
                %v1064 = vld [vmem:[%s1058 + $0x10] sm:$0xff]
                %1065 = vst [vmem:[%s1059 + $0x10] sm:$0xff] %v1064
                %v1066 = vld [vmem:[%s1058 + $0x18] sm:$0xff]
                %1067 = vst [vmem:[%s1059 + $0x18] sm:$0xff] %v1066
                %v1068 = vld [vmem:[%s1058 + $0x20] sm:$0xff]
                %1069 = vst [vmem:[%s1059 + $0x20] sm:$0xff] %v1068
                %v1070 = vld [vmem:[%s1058 + $0x28] sm:$0xff]
                %1071 = vst [vmem:[%s1059 + $0x28] sm:$0xff] %v1070
                %v1072 = vld [vmem:[%s1058 + $0x30] sm:$0xff]
                %1073 = vst [vmem:[%s1059 + $0x30] sm:$0xff] %v1072
                %v1074 = vld [vmem:[%s1058 + $0x38] sm:$0xff]
                %1075 = vst [vmem:[%s1059 + $0x38] sm:$0xff] %v1074
                %v1076 = vld [vmem:[%s1058 + $0x40] sm:$0xff]
                %1077 = vst [vmem:[%s1059 + $0x40] sm:$0xff] %v1076
                %v1078 = vld [vmem:[%s1058 + $0x48] sm:$0xff]
                %1079 = vst [vmem:[%s1059 + $0x48] sm:$0xff] %v1078
                %v1080 = vld [vmem:[%s1058 + $0x50] sm:$0xff]
                %1081 = vst [vmem:[%s1059 + $0x50] sm:$0xff] %v1080
                %v1082 = vld [vmem:[%s1058 + $0x58] sm:$0xff]
                %1083 = vst [vmem:[%s1059 + $0x58] sm:$0xff] %v1082
                %v1084 = vld [vmem:[%s1058 + $0x60] sm:$0xff]
                %1085 = vst [vmem:[%s1059 + $0x60] sm:$0xff] %v1084
                %v1086 = vld [vmem:[%s1058 + $0x68] sm:$0xff]
                %1087 = vst [vmem:[%s1059 + $0x68] sm:$0xff] %v1086
                %v1088 = vld [vmem:[%s1058 + $0x70] sm:$0xff]
                %1089 = vst [vmem:[%s1059 + $0x70] sm:$0xff] %v1088
                %v1090 = vld [vmem:[%s1058 + $0x78] sm:$0xff]
                %1091 = vst [vmem:[%s1059 + $0x78] sm:$0xff] %v1090
                %s1092 = sadd.s32 1, %s1057
                %p1093 = scmp.ge.s32.totalorder %s1092, %s1050
                %s1094 = scalar_select %p1093, 0, %s1092
                %s1095 = smul.u32 %s1094, 128
                %s1096 = smul.u32 %s1094, 128
                %s1097 = scalar_lea.vmem %s1030, %s1095 [#allocation2]
                %s1098 = scalar_lea.vmem %s1041, %s1096
              $region49: #{_policy_forward_impl.1} parent=43 // loop_footer
                %s1054 = sadd.s32 %s1052, 1
              $region50: #{_policy_forward_impl.1} parent=43 // loop_footer_branch
                %1051 = sbr.rel target = $region46
              $region51: #{_policy_forward_impl.1} parent=43 // loop_exit
                _
              %s1099 = sshrl.u32 %s1037, 4
              %s1100 = sand.u32 %s1037, 15
              %s1101 = smul.u32 %s1099, 16
              %s1102 = smul.u32 8, %s1101
              %s1103 = scalar_lea.vmem %s1030, %s1102 [#allocation2]
              %s1104 = smul.u32 8, %s1101
              %s1105 = scalar_lea.vmem %s1041, %s1104
              // While loop
              $region52: #{_policy_forward_impl.1} parent=43 // loop_pre_header
                _
              $region53: #{_policy_forward_impl.1} parent=43 // loop_header
                %s1107 = sphi 0, %s1109
                %p1108 = scmp.ge.s32.totalorder %s1107, %s1100
                %s1112 = sphi 0, %s1119
                %s1113 = sphi %s1103, %s1122
                %s1114 = sphi %s1105, %s1123
              $region54: #{_policy_forward_impl.1} parent=43 // loop_header_branch
                %1111 = sbr.rel (%p1108) target = $region58
              $region55: #{_policy_forward_impl.1} parent=43 // loop_body
                %v1115 = vld [vmem:[%s1113] sm:$0xff]
                %1116 = vst [vmem:[%s1114] sm:$0xff] %v1115
                %s1117 = sadd.s32 1, %s1112
                %p1118 = scmp.ge.s32.totalorder %s1117, %s1100
                %s1119 = scalar_select %p1118, 0, %s1117
                %s1120 = smul.u32 %s1119, 8
                %s1121 = smul.u32 %s1119, 8
                %s1122 = scalar_lea.vmem %s1103, %s1120 [#allocation2]
                %s1123 = scalar_lea.vmem %s1105, %s1121
              $region56: #{_policy_forward_impl.1} parent=43 // loop_footer
                %s1109 = sadd.s32 %s1107, 1
              $region57: #{_policy_forward_impl.1} parent=43 // loop_footer_branch
                %1106 = sbr.rel target = $region53
              $region58: #{_policy_forward_impl.1} parent=43 // loop_exit
                _
            $region44: #{_policy_forward_impl.1} parent=35 // pred_fallthru
              _
          $region36: #{_policy_forward_impl.1} parent=31 // pred_fallthru
            _
          %1202 = vnop
        $region32: #{_policy_forward_impl.1} parent=27 // pred_fallthru
          _
      $region28: #{_policy_forward_impl.1} parent=5 // pred_fallthru
        _
      %p1203 = scmp.le.s32.totalorder 2, %s8
      // Predicated region
      $region81: #{_policy_forward_impl.1} parent=5 // pred_check
        %p1204 = pneg %p1203
      $region82: #{_policy_forward_impl.1} parent=5 // pred_check_branch
        %1206 = sbr.rel (%p1204) target = $region84
      $region83: #{_policy_forward_impl.1} parent=5 // pred_region
        %s1207 = ssub.s32 %s8, 2
        // Predicated region
        $region85: #{_policy_forward_impl.1} parent=83 // pred_check
          %p1208 = pneg %p84
        $region86: #{_policy_forward_impl.1} parent=83 // pred_check_branch
          %1210 = sbr.rel (%p1208) target = $region88
        $region87: #{_policy_forward_impl.1} parent=83 // pred_region
          %s1211 = sand.u32 %s69, 1
          %s1212 = sand.u32 %s69, 1
          %s1213 = smul.addr %s1212, 128
          %s1214 = scalar_lea.vmem [#allocation2], %s1213
        $region88: #{_policy_forward_impl.1} parent=83 // pred_fallthru
          _
      $region84: #{_policy_forward_impl.1} parent=5 // pred_fallthru
        _
    $region6: #{_policy_forward_impl.1} parent=1 // loop_footer
      %s12 = sadd.s32 1, %s8
    $region7: #{_policy_forward_impl.1} parent=1 // loop_footer_branch
      %7 = sbr.rel target = $region3
    $region8: #{_policy_forward_impl.1} parent=1 // loop_exit
      _

</llo_original>
